<compile_context>
chip_gen: v5e
topology: v5e:2x2
jax: 0.10.0
libtpu: 0.0.40
codegen_flags: <defaults>
</compile_context>

<pallas_src>
import functools

import jax
import jax.numpy as jnp
from jax.experimental import pallas as pl
from jax.experimental.pallas import tpu as pltpu


# ---------------------------------------------------------------------------
# Helpers
# ---------------------------------------------------------------------------
def _round_up(n, m):
    return ((n + m - 1) // m) * m


def _largest_divisor_leq(n, cap):
    cap = max(1, min(n, cap))
    while n % cap != 0:
        cap -= 1
    return cap


def _vmem_budget_bytes(frac=0.75):
    """~75% of the per-core VMEM; falls back to the smallest generation (v7x)."""
    cap = 64 * 1024 * 1024  # conservative default: v7x per-TensorCore VMEM
    try:
        info = pltpu.get_tpu_info()
        cap = int(getattr(info, "vmem_capacity_bytes", cap)) or cap
    except Exception:
        pass
    return int(cap * frac)


# ---------------------------------------------------------------------------
# Kernels
# ---------------------------------------------------------------------------
def _cam_fused_kernel(gamma_ref, x_ref, o_ref, *, matmul_dtype):
    """Whole (Bt, C, Np) block resident in VMEM; energy+softmax+apply fused."""
    x = x_ref[...]                                    # (Bt, C, Np) f32
    xm = x.astype(matmul_dtype)                       # bf16 feed for the MXU

    # energy[b] = x[b] @ x[b]^T  — batched NT contraction over the last dims.
    # TODO(synk): inspect pl.lower_as_mlir for an XLU vxpose here; if present,
    # feed a pre-transposed (Bt, Np, C) stream instead of the NT contraction.
    energy = jax.lax.dot_general(
        xm, xm, dimension_numbers=(((2,), (2,)), ((0,), (0,))),
        preferred_element_type=jnp.float32)           # (Bt, C, C) f32

    # softmax(rowmax - energy): its numerically-stable shift == rowmin - energy,
    # so a single row reduction suffices.  Exact division (no approx recip).
    e_min = jnp.min(energy, axis=-1, keepdims=True)
    p = jnp.exp(e_min - energy)
    attn = p / jnp.sum(p, axis=-1, keepdims=True)     # (Bt, C, C) f32

    out = jax.lax.dot_general(
        attn.astype(matmul_dtype), xm,
        dimension_numbers=(((2,), (1,)), ((0,), (0,))),
        preferred_element_type=jnp.float32)           # (Bt, C, Np) f32

    o_ref[...] = (gamma_ref[0] * out + x).astype(o_ref.dtype)


def _cam_attention_kernel(x_ref, attn_ref, acc_ref, *, matmul_dtype):
    """Pass 1 (tiled path): accumulate energy over N-tiles, emit attention."""
    k = pl.program_id(1)

    @pl.when(k == 0)
    def _():
        acc_ref[...] = jnp.zeros_like(acc_ref)

    xm = x_ref[0].astype(matmul_dtype)                # (C, tn)
    # TODO(synk): same NT-contraction / vxpose check as in the fused kernel.
    acc_ref[...] += jax.lax.dot_general(
        xm, xm, dimension_numbers=(((1,), (1,)), ((), ())),
        preferred_element_type=jnp.float32)           # (C, C) f32 accumulator

    @pl.when(k == pl.num_programs(1) - 1)
    def _():
        energy = acc_ref[...]
        e_min = jnp.min(energy, axis=-1, keepdims=True)
        p = jnp.exp(e_min - energy)
        attn_ref[0] = p / jnp.sum(p, axis=-1, keepdims=True)


def _cam_apply_kernel(gamma_ref, attn_ref, x_ref, o_ref, *, matmul_dtype):
    """Pass 2 (tiled path): out_tile = gamma * (attention @ x_tile) + x_tile."""
    x = x_ref[0]                                      # (C, tn) f32
    out = jnp.dot(attn_ref[0].astype(matmul_dtype), x.astype(matmul_dtype),
                  preferred_element_type=jnp.float32)
    o_ref[0] = (gamma_ref[0] * out + x).astype(o_ref.dtype)


# ---------------------------------------------------------------------------
# Wrappers
# ---------------------------------------------------------------------------
def _cam_fused(x_flat, gamma, Np, matmul_dtype, budget, per_b):
    B, C, N = x_flat.shape
    if Np != N:
        x_flat = jnp.pad(x_flat, ((0, 0), (0, 0), (0, Np - N)))

    # Bt from the VMEM budget; keep >=2 grid steps on the parallel batch axis
    # so both v7x TensorCores get work.
    bt_cap = max(1, budget // per_b)
    bt_max = min(bt_cap, max(1, B // 2)) if B >= 2 else 1
    Bt = _largest_divisor_leq(B, bt_max)

    kernel = functools.partial(_cam_fused_kernel, matmul_dtype=matmul_dtype)
    return pl.pallas_call(
        kernel,
        out_shape=jax.ShapeDtypeStruct((B, C, Np), x_flat.dtype),
        grid_spec=pltpu.PrefetchScalarGridSpec(
            num_scalar_prefetch=0,
            grid=(B // Bt,),
            in_specs=[
                pl.BlockSpec(memory_space=pltpu.SMEM),           # gamma scalar
                pl.BlockSpec((Bt, C, Np), lambda b: (b, 0, 0)),  # x batch tile
            ],
            out_specs=pl.BlockSpec((Bt, C, Np), lambda b: (b, 0, 0)),
        ),
        compiler_params=pltpu.CompilerParams(
            dimension_semantics=("parallel",),
            vmem_limit_bytes=int(budget)),
        cost_estimate=pl.CostEstimate(
            flops=4 * B * C * C * Np,
            transcendentals=B * C * C,
            bytes_accessed=8 * B * C * Np),
    )(gamma, x_flat)


def _cam_tiled(x_flat, gamma, n_tile, matmul_dtype, budget):
    B, C, N = x_flat.shape
    # N-tile: lane multiple of 128 (>=256 preferred on v6e/v7x for MXU width).
    tn = _round_up(min(n_tile, _round_up(N, 128)), 128)
    Np = _round_up(N, tn)
    if Np != N:
        x_flat = jnp.pad(x_flat, ((0, 0), (0, 0), (0, Np - N)))
    n_steps = Np // tn

    # Pass 1: attention (B, C, C) with a (C, C) f32 accumulator in scratch.
    attn_kernel = functools.partial(_cam_attention_kernel,
                                    matmul_dtype=matmul_dtype)
    attention = pl.pallas_call(
        attn_kernel,
        out_shape=jax.ShapeDtypeStruct((B, C, C), jnp.float32),
        grid_spec=pltpu.PrefetchScalarGridSpec(
            num_scalar_prefetch=0,
            grid=(B, n_steps),                         # reduction axis last
            in_specs=[pl.BlockSpec((1, C, tn), lambda b, k: (b, 0, k))],
            out_specs=pl.BlockSpec((1, C, C), lambda b, k: (b, 0, 0)),
            scratch_shapes=[pltpu.VMEM((C, C), jnp.float32)],
        ),
        compiler_params=pltpu.CompilerParams(
            dimension_semantics=("parallel", "arbitrary"),
            vmem_limit_bytes=int(budget)),
        cost_estimate=pl.CostEstimate(
            flops=2 * B * C * C * Np,
            transcendentals=B * C * C,
            bytes_accessed=4 * B * C * Np + 4 * B * C * C),
    )(x_flat)

    # Pass 2: out = gamma * (attention @ x) + x, N-tiled in and out.
    apply_kernel = functools.partial(_cam_apply_kernel,
                                     matmul_dtype=matmul_dtype)
    return pl.pallas_call(
        apply_kernel,
        out_shape=jax.ShapeDtypeStruct((B, C, Np), x_flat.dtype),
        grid_spec=pltpu.PrefetchScalarGridSpec(
            num_scalar_prefetch=0,
            grid=(B, n_steps),
            in_specs=[
                pl.BlockSpec(memory_space=pltpu.SMEM),              # gamma
                pl.BlockSpec((1, C, C), lambda b, k: (b, 0, 0)),    # attention
                pl.BlockSpec((1, C, tn), lambda b, k: (b, 0, k)),   # x N-tile
            ],
            out_specs=pl.BlockSpec((1, C, tn), lambda b, k: (b, 0, k)),
        ),
        compiler_params=pltpu.CompilerParams(
            dimension_semantics=("parallel", "parallel"),
            vmem_limit_bytes=int(budget)),
        cost_estimate=pl.CostEstimate(
            flops=2 * B * C * C * Np,
            transcendentals=0,
            bytes_accessed=8 * B * C * Np + 4 * B * C * C),
    )(gamma, attention, x_flat)


def cam_module_forward(x, gamma, *, matmul_dtype=jnp.bfloat16,
                       n_tile=512, force_tiled=False):
    """x: (B, C, H, W, Ch) f32, gamma: (1,) f32 -> (B, C, H, W, Ch) f32."""
    B, C, H, W, Ch = x.shape
    N = H * W * Ch
    x_flat = x.reshape(B, C, N)

    budget = _vmem_budget_bytes()
    Np_fused = _round_up(N, 128)
    # Fused-path VMEM per batch element: double-buffered in/out blocks, the
    # materialized `out` temporary, bf16 operand copies, (C,C) softmax temps.
    per_b = 6 * C * Np_fused * 4 + 4 * C * C * 4
    use_fused = (not force_tiled) and per_b <= budget

    if use_fused:
        out_flat = _cam_fused(x_flat, gamma, Np_fused, matmul_dtype,
                              budget, per_b)
    else:
        out_flat = _cam_tiled(x_flat, gamma, n_tile, matmul_dtype, budget)

    return out_flat[:, :, :N].reshape(B, C, H, W, Ch)


# ---------------------------------------------------------------------------
# Pure-JAX reference (replicates the PyTorch forward)
# ---------------------------------------------------------------------------
def cam_module_ref(x, gamma, matmul_dtype=None):
    """If matmul_dtype is given, matmul operands are cast to it (f32 accum) to
    mirror the kernel's MXU feeding; otherwise full-precision f32 matmuls."""
    B, C, H, W, Ch = x.shape
    q = x.reshape(B, C, -1)
    prec = jax.lax.Precision.HIGHEST if matmul_dtype is None else None
    qm = q if matmul_dtype is None else q.astype(matmul_dtype)
    energy = jnp.einsum("bcn,bkn->bck", qm, qm,
                        preferred_element_type=jnp.float32, precision=prec)
    energy_new = jnp.max(energy, axis=-1, keepdims=True) - energy
    attention = jax.nn.softmax(energy_new, axis=-1)
    am = attention if matmul_dtype is None else attention.astype(matmul_dtype)
    out = jnp.einsum("bck,bkn->bcn", am, qm,
                     preferred_element_type=jnp.float32, precision=prec)
    return gamma * out.reshape(x.shape) + x


# ---------------------------------------------------------------------------
# Self-test
# ---------------------------------------------------------------------------
if __name__ == "__main__":
    key = jax.random.PRNGKey(0)
    B, C, H, W, Ch = 2, 8, 4, 4, 8          # N = H*W*Ch = 128 (lane-aligned)
    x = jax.random.normal(key, (B, C, H, W, Ch), dtype=jnp.float32)

    # Module __init__: gamma = Parameter(torch.zeros(1)).
    gamma0 = jnp.zeros((1,), dtype=jnp.float32)
    out0 = jax.block_until_ready(cam_module_forward(x, gamma0))
    # gamma = 0 -> output must equal x (attention branch multiplied by 0).
    assert jnp.allclose(out0, x, atol=1e-6)

    gamma = jnp.full((1,), 0.5, dtype=jnp.float32)

    # (a) exact-f32 matmul mode against the full-precision reference.
    out_f32 = jax.block_until_ready(
        cam_module_forward(x, gamma, matmul_dtype=jnp.float32))
    ref_f32 = cam_module_ref(x, gamma)
    assert jnp.allclose(out_f32, ref_f32, atol=2e-3, rtol=2e-3)

    # (b) default bf16 MXU operands against a reference applying the same
    #     casts (f32 accumulation) — validates the kernel logic independent of
    #     the (intentional) reduced matmul operand precision.
    out_bf16 = jax.block_until_ready(cam_module_forward(x, gamma))
    ref_bf16 = cam_module_ref(x, gamma, matmul_dtype=jnp.bfloat16)
    assert jnp.allclose(out_bf16, ref_bf16, atol=5e-3, rtol=5e-3)

    # (c) force the N-tiled two-pass path on a non-lane-aligned N (192 -> pad
    #     to 256, two 128-wide tiles) to exercise the (C,C) accumulator.
    x2 = jax.random.normal(jax.random.PRNGKey(1), (2, 8, 4, 6, 8),
                           dtype=jnp.float32)
    out_tiled = jax.block_until_ready(
        cam_module_forward(x2, gamma, force_tiled=True, n_tile=128))
    ref_tiled = cam_module_ref(x2, gamma, matmul_dtype=jnp.bfloat16)
    assert jnp.allclose(out_tiled, ref_tiled, atol=5e-3, rtol=5e-3)

    print("KERNEL_OK")
</pallas_src>

<mosaic_0001>
module attributes {stable_mosaic.version = 11 : i64} {
  func.func @_cam_fused_kernel(%arg0: i32, %arg1: memref<1xf32, #tpu.memory_space<smem>>, %arg2: memref<1x8x128xf32, #tpu.memory_space<vmem>>, %arg3: memref<1x8x128xf32, #tpu.memory_space<vmem>>) attributes {dimension_semantics = [#tpu.dimension_semantics<parallel>], iteration_bounds = array<i64: 2>, scalar_prefetch = 0 : i64, scratch_operands = 0 : i64, tpu.core_type = #tpu.core_type<tc>, window_params = [{transform_indices = @transform_0, window_bounds = array<i64: 1>}, {transform_indices = @transform_1, window_bounds = array<i64: 1, 8, 128>}, {transform_indices = @transform_2, window_bounds = array<i64: 1, 8, 128>}]} {
    %c0 = arith.constant 0 : index
    %c0_0 = arith.constant 0 : index
    %c0_1 = arith.constant 0 : index
    %0 = vector.load %arg2[%c0, %c0_0, %c0_1] : memref<1x8x128xf32, #tpu.memory_space<vmem>>, vector<1x8x128xf32>
    %1 = arith.truncf %0 : vector<1x8x128xf32> to vector<1x8x128xbf16>
    %cst = arith.constant dense<0.000000e+00> : vector<1x8x8xf32>
    %2 = tpu.matmul %1, %1, %cst {dimension_numbers = #tpu.dot_dimension_numbers<[2], [2], [1], [1], [0, 0, 0, 1, 1, 1], [0], [0]>} : vector<1x8x128xbf16>, vector<1x8x128xbf16>, vector<1x8x8xf32> -> vector<1x8x8xf32>
    %cst_2 = arith.constant dense<0x7F800000> : vector<1x8xf32>
    %3 = vector.multi_reduction <minimumf>, %2, %cst_2 [2] : vector<1x8x8xf32> to vector<1x8xf32>
    %4 = vector.shape_cast %3 : vector<1x8xf32> to vector<1x8x1xf32>
    %5 = vector.broadcast %4 : vector<1x8x1xf32> to vector<1x8x8xf32>
    %6 = arith.subf %5, %2 : vector<1x8x8xf32>
    %7 = math.exp %6 : vector<1x8x8xf32>
    %cst_3 = arith.constant dense<0.000000e+00> : vector<1x8xf32>
    %8 = vector.multi_reduction <add>, %7, %cst_3 [2] : vector<1x8x8xf32> to vector<1x8xf32>
    %9 = vector.shape_cast %8 : vector<1x8xf32> to vector<1x8x1xf32>
    %10 = vector.broadcast %9 : vector<1x8x1xf32> to vector<1x8x8xf32>
    %11 = arith.divf %7, %10 : vector<1x8x8xf32>
    %12 = arith.truncf %11 : vector<1x8x8xf32> to vector<1x8x8xbf16>
    %cst_4 = arith.constant dense<0.000000e+00> : vector<1x8x128xf32>
    %13 = tpu.matmul %12, %1, %cst_4 {dimension_numbers = #tpu.dot_dimension_numbers<[2], [1], [1], [2], [0, 0, 0, 1, 1, 2], [0], [0]>} : vector<1x8x8xbf16>, vector<1x8x128xbf16>, vector<1x8x128xf32> -> vector<1x8x128xf32>
    %c0_5 = arith.constant 0 : index
    %14 = memref.load %arg1[%c0_5] : memref<1xf32, #tpu.memory_space<smem>>
    %15 = vector.broadcast %14 : f32 to vector<1x8x128xf32>
    %16 = arith.mulf %15, %13 : vector<1x8x128xf32>
    %17 = arith.addf %16, %0 : vector<1x8x128xf32>
    %c0_6 = arith.constant 0 : index
    %c0_7 = arith.constant 0 : index
    %c0_8 = arith.constant 0 : index
    %18 = vector.load %arg3[%c0_6, %c0_7, %c0_8] : memref<1x8x128xf32, #tpu.memory_space<vmem>>, vector<1x8x128xf32>
    tpu.vector_store %arg3[%c0_6, %c0_7, %c0_8], %17 {strides = array<i32>} : memref<1x8x128xf32, #tpu.memory_space<vmem>>, vector<1x8x128xf32>,
    return
  }
  func.func @transform_0(%arg0: i32) -> i32 {
    %c0_i32 = arith.constant 0 : i32
    %c0_i32_0 = arith.constant 0 : i32
    return %c0_i32 : i32
  }
  func.func @transform_1(%arg0: i32) -> (i32, i32, i32) {
    %c0_i32 = arith.constant 0 : i32
    %c0_i32_0 = arith.constant 0 : i32
    %c0_i32_1 = arith.constant 0 : i32
    return %arg0, %c0_i32, %c0_i32_0 : i32, i32, i32
  }
  func.func @transform_2(%arg0: i32) -> (i32, i32, i32) {
    %c0_i32 = arith.constant 0 : i32
    %c0_i32_0 = arith.constant 0 : i32
    %c0_i32_1 = arith.constant 0 : i32
    return %arg0, %c0_i32, %c0_i32_0 : i32, i32, i32
  }
}

</mosaic_0001>

<llo_original>
// kernel: tpu_custom_call.1
$region0: #{tpu_custom_call.1}
  #allocation0 [shape = 'u32[]', space=smem, size = 0x4, offset = 0x4, fixed_abs, tag = 'smem constant byte address 0x4 - core index']
  #allocation1 [shape = 'u32[72,128]{1,0:T(1,128)}', space=vmem, size = 0x9000, scoped, tag = 'internal scratch']
  #allocation2 [shape = 'f32[1]{0:T(128)S(6)}', space=smem, size = 0x200, scoped, tag = 'scoped memory for tpu_custom_call.1']
  %s0 = inlined_call_operand.<no memory space> [shape: f32[1], index: 0, kind: input, shape index: {}]
  %s1 = inlined_call_operand.hbm [shape: f32[2,8,128], index: 1, kind: input, shape index: {}]
  %s2 = inlined_call_operand.hbm [shape: f32[2,8,128], index: 2, kind: output, shape index: {}]
  %s3 = sld [smem:[#allocation0]]
  $region45: #{tpu_custom_call.1} parent=0
    _
  %s5 = ssub.s32 1, %s3
  %s6 = scalar_select 0, %s5, %s3
  %7 = sst [smem:[#allocation2]] %s0
  $region1: #{tpu_custom_call.1} parent=0
    #allocation3 [shape = 'u8[8192]{0}', space=vmem, size = 0x2000, scoped, tag = 'input window, operand 1']
    #allocation4 [shape = 's32[2]{0}', space=sflag, size = 0x8, scoped, tag = 'scoped memory for tpu_custom_call.1']
    #allocation5 [shape = 's32[2]{0}', space=sflag, size = 0x8, scoped, tag = 'scoped memory for tpu_custom_call.1']
    #allocation6 [shape = 'u8[8192]{0}', space=vmem, size = 0x2000, scoped, tag = 'output window, operand 0']
    %8 = vsyncpa [#allocation4], 0
    %s9 = scalar_lea.sflag [#allocation4], 1
    %10 = vsyncpa %s9, 0
    %11 = vsyncpa [#allocation5], 0
    %s12 = scalar_lea.sflag [#allocation5], 1
    %13 = vsyncpa %s12, 0
    loop: start=0, step=1, limit=4
    $region2: #{tpu_custom_call.1} parent=1 // loop_pre_header
      _
    $region3: #{tpu_custom_call.1} parent=1 // loop_header
      %s15 = sphi 0, %s19
      %p16 = scmp.ge.s32.totalorder %s15, 4
      %s23 = sphi 0, %s23
      %s25 = sphi 0, %s23
      %s26 = sphi 0, %s25
      %s40 = sphi 0, %s26
      %s46 = sphi 0, %s48
      %s49 = sphi 0, %s46
      %s50 = sphi 0, %s49
      %s66 = sphi 0, %s50
      %s72 = sphi 0, %s74
      %s75 = sphi 0, %s72
      %s76 = sphi 0, %s75
      %s92 = sphi 0, %s76
    $region4: #{tpu_custom_call.1} parent=1 // loop_header_branch
      %18 = sbr.rel (%p16) target = $region8
    $region5: #{tpu_custom_call.1} parent=1 // loop_body
      %s20 = ssub.s32 %s15, 1
      %s21 = ssub.s32 %s15, 2
      %s22 = sadd.s32 %s15, 1
      %s24 = sadd.s32 %s23, 1
      %p27 = scmp.eq.s32.totalorder %s15, 1
      %p28 = scmp.ne.s32.totalorder %s23, %s25
      %p29 = scmp.eq.s32.totalorder %s15, 0
      %p30 = por %p28, %p29
      %p31 = scmp.ne.s32.totalorder %s23, %s25
      %p32 = scmp.eq.s32.totalorder %s20, 1
      %p33 = por %p31, %p32
      %p34 = scmp.ne.s32.totalorder %s25, %s26
      %p35 = scmp.eq.s32.totalorder %s20, 0
      %p36 = por %p34, %p35
      %p37 = scmp.ne.s32.totalorder %s25, %s26
      %p38 = scmp.eq.s32.totalorder %s21, 1
      %p39 = por %p37, %p38
      %p41 = scmp.ne.s32.totalorder %s26, %s40
      %p42 = scmp.eq.s32.totalorder %s21, 0
      %p43 = por %p41, %p42
      %s44 = ssub.s32 %s15, %s22
      %p45 = scmp.eq.s32.totalorder %s44, 0
      %s47 = sadd.s32 %s46, 1
      %s48 = scalar_select %p45, %s46, %s47
      %p51 = pneg %p45
      %p52 = scmp.eq.s32.totalorder %s15, 1
      %p53 = por %p51, %p52
      %p54 = scmp.ne.s32.totalorder %s46, %s49
      %p55 = scmp.eq.s32.totalorder %s15, 0
      %p56 = por %p54, %p55
      %p57 = scmp.ne.s32.totalorder %s46, %s49
      %p58 = scmp.eq.s32.totalorder %s20, 1
      %p59 = por %p57, %p58
      %p60 = scmp.ne.s32.totalorder %s49, %s50
      %p61 = scmp.eq.s32.totalorder %s20, 0
      %p62 = por %p60, %p61
      %p63 = scmp.ne.s32.totalorder %s49, %s50
      %p64 = scmp.eq.s32.totalorder %s21, 1
      %p65 = por %p63, %p64
      %p67 = scmp.ne.s32.totalorder %s50, %s66
      %p68 = scmp.eq.s32.totalorder %s21, 0
      %p69 = por %p67, %p68
      %s70 = ssub.s32 %s15, %s22
      %p71 = scmp.eq.s32.totalorder %s70, 0
      %s73 = sadd.s32 %s72, 1
      %s74 = scalar_select %p71, %s72, %s73
      %p77 = pneg %p71
      %p78 = scmp.eq.s32.totalorder %s15, 1
      %p79 = por %p77, %p78
      %p80 = scmp.ne.s32.totalorder %s72, %s75
      %p81 = scmp.eq.s32.totalorder %s15, 0
      %p82 = por %p80, %p81
      %p83 = scmp.ne.s32.totalorder %s72, %s75
      %p84 = scmp.eq.s32.totalorder %s20, 1
      %p85 = por %p83, %p84
      %p86 = scmp.ne.s32.totalorder %s75, %s76
      %p87 = scmp.eq.s32.totalorder %s20, 0
      %p88 = por %p86, %p87
      %p89 = scmp.ne.s32.totalorder %s75, %s76
      %p90 = scmp.eq.s32.totalorder %s21, 1
      %p91 = por %p89, %p90
      %p93 = scmp.ne.s32.totalorder %s76, %s92
      %p94 = scmp.eq.s32.totalorder %s21, 0
      %p95 = por %p93, %p94
      %p96 = scmp.le.s32.totalorder 1, %s15
      %p97 = scmp.lt.s32.totalorder %s15, 3
      %p98 = pnand %p96, %p97
      %p99 = pneg %p98
      // Predicated region
      $region9: #{tpu_custom_call.1} parent=5 // pred_check
        _
      $region10: #{tpu_custom_call.1} parent=5 // pred_check_branch
        %101 = sbr.rel (%p98) target = $region12
      $region11: #{tpu_custom_call.1} parent=5 // pred_region
        %s102 = ssub.s32 %s15, 1
        // Predicated region
        $region13: #{tpu_custom_call.1} parent=11 // pred_check
          %p103 = pneg %p36
        $region14: #{tpu_custom_call.1} parent=11 // pred_check_branch
          %105 = sbr.rel (%p103) target = $region16
        $region15: #{tpu_custom_call.1} parent=11 // pred_region
          _
        $region16: #{tpu_custom_call.1} parent=11 // pred_fallthru
          _
      $region12: #{tpu_custom_call.1} parent=5 // pred_fallthru
        _
      %p106 = scmp.lt.s32.totalorder %s15, 2
      // Predicated region
      $region17: #{tpu_custom_call.1} parent=5 // pred_check
        %p107 = pneg %p106
      $region18: #{tpu_custom_call.1} parent=5 // pred_check_branch
        %109 = sbr.rel (%p107) target = $region20
      $region19: #{tpu_custom_call.1} parent=5 // pred_region
        // Predicated region
        $region21: #{tpu_custom_call.1} parent=19 // pred_check
          %p110 = pneg %p56
        $region22: #{tpu_custom_call.1} parent=19 // pred_check_branch
          %112 = sbr.rel (%p110) target = $region24
        $region23: #{tpu_custom_call.1} parent=19 // pred_region
          %s113 = sand.u32 %s46, 1
          %s114 = scalar_lea.sflag [#allocation4], %s113
          %s115 = sand.u32 %s46, 1
          %s116 = smul.addr %s115, 8
          %s117 = scalar_lea.vmem [#allocation3], %s116
          %119 = vsyncadd %s114, 0
          %s120 = smul.addr %s15, 8
          %s121 = scalar_lea.hbm %s1, %s120
          %s123 = sshll.u32 %s121, 4
          %s124 = int_to_ptr.hbm [resolvable:$true] %s123
          %s125 = sshll.u32 %s117, 4
          %s126 = int_to_ptr.vmem [resolvable:$true] %s125
          %128 = dma.hbm_to_vmem [thread:$0]  %s124, 128, %s126, %s114
        $region24: #{tpu_custom_call.1} parent=19 // pred_fallthru
          _
      $region20: #{tpu_custom_call.1} parent=5 // pred_fallthru
        _
      %p129 = scmp.le.s32.totalorder 1, %s15
      %p130 = scmp.lt.s32.totalorder %s15, 3
      %p131 = pnand %p129, %p130
      %p132 = pneg %p131
      // Predicated region
      $region25: #{tpu_custom_call.1} parent=5 // pred_check
        _
      $region26: #{tpu_custom_call.1} parent=5 // pred_check_branch
        %134 = sbr.rel (%p131) target = $region28
      $region27: #{tpu_custom_call.1} parent=5 // pred_region
        %s135 = ssub.s32 %s15, 1
        %s136 = sand.u32 %s49, 1
        %s137 = scalar_lea.sflag [#allocation4], %s136
        %s138 = sand.u32 %s49, 1
        %s139 = smul.addr %s138, 8
        %s140 = scalar_lea.vmem [#allocation3], %s139
        // Predicated region
        $region29: #{tpu_custom_call.1} parent=27 // pred_check
          %p141 = pneg %p62
        $region30: #{tpu_custom_call.1} parent=27 // pred_check_branch
          %143 = sbr.rel (%p141) target = $region32
        $region31: #{tpu_custom_call.1} parent=27 // pred_region
          %145 = dma.done %s137, 128
        $region32: #{tpu_custom_call.1} parent=27 // pred_fallthru
          _
        %p146 = pneg %p36
        %p147 = pneg %p33
        %s148 = sand.u32 %s49, 1
        %s149 = scalar_lea.sflag [#allocation4], %s148
        %s150 = sand.u32 %s49, 1
        %s151 = smul.addr %s150, 8
        %s152 = scalar_lea.vmem [#allocation3], %s151
        %p153 = pneg %p62
        %p154 = pneg %p59
        %p155 = pneg %p88
        %p156 = pneg %p85
        %s157 = sand.u32 %s75, 1
        %s158 = scalar_lea.sflag [#allocation5], %s157
        %s159 = sand.u32 %s75, 1
        %s160 = smul.addr %s159, 8
        %s161 = scalar_lea.vmem [#allocation6], %s160
        %v163 = vld [vmem:[%s140] sm:$0xff]
        %v164 = vpack.c.bf16 %v163, %v163
        %165 = vmatpush.bf16.xpose.msra.mxu0 0
        %166 = vmatpush.bf16.xpose.msra.mxu0 0
        %167 = vmatpush.bf16.xpose.msra.mxu0 0
        %168 = vmatpush.bf16.xpose.msra.mxu0 0
        %169 = vmatpush.bf16.xpose.msra.mxu0 0
        %170 = vmatpush.bf16.xpose.msra.mxu0 0
        %171 = vmatpush.bf16.xpose.msra.mxu0 0
        %172 = vmatpush.bf16.xpose.msra.mxu0 %v164
        %173 = vmatmul.bf16.gmra.mxu0 %v164
        %v174 = vpop.f32.mrf.mxu0
        %v175 = vadd.f32 0.0, %v174
        %v176 = vpop.f32.mrf.mxu0
        %177 = vdwg.mxu0
        %vm178 = vcmask 64512
        %v179 = vsel %vm178, %v175, inf
        %180 = vmin.xlane.f32.xlu0 %v179
        %v181 = vpop.xlane.xlu0 %180
        %v182 = vsub.f32 %v181, %v175
        %v183 = vmul.f32 %v182, 1.442695
        %v184 = vpow.pop %v183
        %v185 = vsel %vm178, %v184, 0.0
        %186 = vadd.xlane.f32.xlu0 %v185
        %v187 = vpop.xlane.xlu0 %186
        %v188 = vrcp.pop %v187
        %v189 = vmul.f32 %v187, %v188
        %v190 = vsub.f32 1.0, %v189
        %v191 = vmul.f32 %v188, %v190
        %v192 = vadd.f32 %v188, %v191
        %vm193 = vweird.f32 %v187
        %vm194 = vweird.f32 %v188
        %vm195 = vmor %vm193, %vm194
        %v196 = vsel %vm195, %v188, %v192
        %v197 = vand.u32 2147483647, %v187
        %vm198 = vcmp.eq.f32.partialorder %v197, 8.507059e+37
        %v199 = vand.u32 %v187, 2147483648
        %v200 = vor.u32 1.1754944e-38, %v199
        %v201 = vsel %vm198, %v200, %v196
        %v202 = vmul.f32 %v184, %v201
        %v203 = vpack.c.bf16 %v202, %v202
        %v205 = vsel %vm178, %v203, 0
        %vm207 = vcmask 1043456
        %v209 = vsel %vm207, %v164, 0
        %211 = vmatpush.bf16.msra.mxu0 0
        %212 = vmatpush.bf16.msra.mxu0 0
        %213 = vmatpush.bf16.msra.mxu0 0
        %214 = vmatpush.bf16.msra.mxu0 0
        %215 = vmatpush.bf16.msra.mxu0 0
        %216 = vmatpush.bf16.msra.mxu0 0
        %217 = vmatpush.bf16.msra.mxu0 0
        %218 = vmatpush.bf16.msra.mxu0 %v209
        %219 = vmatmul.bf16.gmra.mxu0 %v205
        %v220 = vpop.f32.mrf.mxu0
        %v221 = vadd.f32 0.0, %v220
        %v222 = vpop.f32.mrf.mxu0
        %223 = vdwg.mxu0
        %s224 = sld [smem:[#allocation2]]
        %v225 = vstv %s224
        %v226 = vmul.f32 %v225, %v221
        %v227 = vadd.f32 %v226, %v163
        %228 = vst [vmem:[%s161] sm:$0xff] %v227
        %s229 = sand.u32 %s75, 1
        %s230 = scalar_lea.sflag [#allocation5], %s229
        %s231 = sand.u32 %s75, 1
        %s232 = smul.addr %s231, 8
        %s233 = scalar_lea.vmem [#allocation6], %s232
        // Predicated region
        $region33: #{tpu_custom_call.1} parent=27 // pred_check
          %p234 = pneg %p85
        $region34: #{tpu_custom_call.1} parent=27 // pred_check_branch
          %236 = sbr.rel (%p234) target = $region36
        $region35: #{tpu_custom_call.1} parent=27 // pred_region
          %238 = vsyncadd %s230, 0
          %s239 = smul.addr %s20, 8
          %s240 = scalar_lea.hbm %s2, %s239
          %s242 = sshll.u32 %s233, 4
          %s243 = int_to_ptr.vmem [resolvable:$true] %s242
          %s244 = sshll.u32 %s240, 4
          %s245 = int_to_ptr.hbm [resolvable:$true] %s244
          %247 = dma.vmem_to_hbm [thread:$0]  %s243, 128, %s245, %s230
        $region36: #{tpu_custom_call.1} parent=27 // pred_fallthru
          _
      $region28: #{tpu_custom_call.1} parent=5 // pred_fallthru
        _
      %p248 = scmp.le.s32.totalorder 2, %s15
      // Predicated region
      $region37: #{tpu_custom_call.1} parent=5 // pred_check
        %p249 = pneg %p248
      $region38: #{tpu_custom_call.1} parent=5 // pred_check_branch
        %251 = sbr.rel (%p249) target = $region40
      $region39: #{tpu_custom_call.1} parent=5 // pred_region
        %s252 = ssub.s32 %s15, 2
        // Predicated region
        $region41: #{tpu_custom_call.1} parent=39 // pred_check
          %p253 = pneg %p91
        $region42: #{tpu_custom_call.1} parent=39 // pred_check_branch
          %255 = sbr.rel (%p253) target = $region44
        $region43: #{tpu_custom_call.1} parent=39 // pred_region
          %s256 = sand.u32 %s76, 1
          %s257 = scalar_lea.sflag [#allocation5], %s256
          %s258 = sand.u32 %s76, 1
          %s259 = smul.addr %s258, 8
          %s260 = scalar_lea.vmem [#allocation6], %s259
          %262 = dma.done %s257, 128
        $region44: #{tpu_custom_call.1} parent=39 // pred_fallthru
          _
      $region40: #{tpu_custom_call.1} parent=5 // pred_fallthru
        _
    $region6: #{tpu_custom_call.1} parent=1 // loop_footer
      %s19 = sadd.s32 1, %s15
    $region7: #{tpu_custom_call.1} parent=1 // loop_footer_branch
      %14 = sbr.rel target = $region3
    $region8: #{tpu_custom_call.1} parent=1 // loop_exit
      _
    %263 = vsyncpa [#allocation4], 1
    %s264 = scalar_lea.sflag [#allocation4], 1
    %265 = vsyncpa %s264, 1
    %266 = vsyncpa [#allocation5], 1
    %s267 = scalar_lea.sflag [#allocation5], 1
    %268 = vsyncpa %s267, 1

</llo_original>
